<compile_context>
chip_gen: v7x
topology: tpu7x:2x2x1
jax: 0.10.0
libtpu: 0.0.40
codegen_flags: <defaults>
</compile_context>

<pallas_src>
import functools

import jax
import jax.numpy as jnp
from jax import lax
from jax.experimental import pallas as pl
from jax.experimental.pallas import tpu as pltpu


def _upsampler_kernel(x_ref, h_ref, w_ref, b_ref, o_ref, *, tile_h, width, low_first):
    """One (batch, row-slab) step: ConvT(3x3,s=2,p=1,op=1) + folded BN + ReLU."""
    W = width
    THW = tile_h * W
    bf16 = jnp.bfloat16

    xb = x_ref[0].astype(bf16)              # (Cin, TILE_H*W)  tile rows, spatial on lanes
    hb = h_ref[0, 0].astype(bf16)           # (Cin, W)         row just below the tile (zeros at bottom)

    # Column index of every flattened position; kills the within-row wrap of +1 shifts.
    col = lax.broadcasted_iota(jnp.int32, (1, THW), 1) % W
    not_last_col = col < (W - 1)

    # Shifted tap operands built just-in-time (no (4*Cin, THW) taps buffer, no padded xp).
    s0 = xb                                                                   # x[m, p]
    s1 = jnp.where(not_last_col, jnp.roll(xb, -1, axis=1), 0).astype(bf16)    # x[m, p+1]
    sW = jnp.concatenate([xb[:, W:], hb], axis=1)                             # x[m+1, p]
    sW1 = jnp.where(not_last_col, jnp.roll(sW, -1, axis=1), 0).astype(bf16)   # x[m+1, p+1]

    def wk(kh, kw):
        return w_ref[kh * 3 + kw]                                             # (Cout, Cin) bf16

    dot = functools.partial(jnp.dot, preferred_element_type=jnp.float32)

    # Only the 9 live tap/parity combinations are computed (f32 accumulation).
    y_ee = dot(wk(1, 1), s0)
    y_eo = dot(wk(1, 2), s0) + dot(wk(1, 0), s1)
    y_oe = dot(wk(2, 1), s0) + dot(wk(0, 1), sW)
    y_oo = dot(wk(2, 2), s0) + dot(wk(2, 0), s1) + dot(wk(0, 2), sW) + dot(wk(0, 0), sW1)

    bias = b_ref[...][:, :1]                                                  # (Cout, 1) f32

    def bf16_bits(y):
        # bias + ReLU, then round-to-nearest-even f32 -> bf16, expressed as the low 16
        # bits of a uint32 (pure 32-bit VPU ops; values are finite & >= 0 after ReLU).
        v = jnp.maximum(y + bias, 0.0)
        b = pltpu.bitcast(v, jnp.uint32)
        return (b + jnp.uint32(0x7FFF) + ((b >> 16) & jnp.uint32(1))) >> 16

    ee, eo = bf16_bits(y_ee), bf16_bits(y_eo)
    oe, oo = bf16_bits(y_oe), bf16_bits(y_oo)

    # Column-parity interleave: pack the two bf16s of each output column pair into one
    # uint32 lane (even column goes in the half that lax.bitcast_convert_type unpacks first).
    if low_first:
        even_rows = ee | (eo << 16)          # output rows 2m
        odd_rows = oe | (oo << 16)           # output rows 2m+1
    else:
        even_rows = eo | (ee << 16)
        odd_rows = oo | (oe << 16)

    # Row-parity interleave: output rows 2m and 2m+1 are laid back to back in the flat,
    # lane-dense output block.  All slice offsets are static (lane-aligned when W%128==0).
    for m in range(tile_h):
        o_ref[0, :, (2 * m) * W:(2 * m + 1) * W] = even_rows[:, m * W:(m + 1) * W]
        o_ref[0, :, (2 * m + 1) * W:(2 * m + 2) * W] = odd_rows[:, m * W:(m + 1) * W]


def _choose_tile_h(H, W, target_lanes=2048):
    """Largest row-tile dividing H whose lane extent is a multiple of 128 and <= target."""
    cands = [t for t in range(1, H + 1) if H % t == 0 and (t * W) % 128 == 0]
    if not cands:
        return H
    fitting = [t for t in cands if t * W <= target_lanes]
    return max(fitting) if fitting else min(cands)


@functools.lru_cache(maxsize=None)
def _u32_low_half_first():
    """Does lax.bitcast_convert_type(uint32 -> 16-bit) put the low half at index 0?"""
    with jax.ensure_compile_time_eval():
        probe = jax.lax.bitcast_convert_type(jnp.uint32(0x0002_0001), jnp.uint16)
        return bool(probe[0] == 1)


def upsampler_block_forward(x_nchw, params, eps=1e-3, tile_h=None):
    """x: (N, Cin, H, W) f32.  Returns (N, Cout, 2H, 2W) bf16."""
    N, Cin, H, W = x_nchw.shape

    w = jnp.asarray(params["conv_w"], jnp.float32)           # torch layout (Cin, Cout, 3, 3)
    b = jnp.asarray(params["conv_b"], jnp.float32)           # (Cout,)
    gamma = jnp.asarray(params["bn_gamma"], jnp.float32)
    beta = jnp.asarray(params["bn_beta"], jnp.float32)
    mean = jnp.asarray(params["bn_mean"], jnp.float32)
    var = jnp.asarray(params["bn_var"], jnp.float32)
    Cout = w.shape[1]

    if tile_h is None:
        tile_h = _choose_tile_h(H, W)
    assert H % tile_h == 0, "tile_h must divide H"
    assert (tile_h * W) % 128 == 0 or tile_h == H, "tile lane extent must be 128-aligned"
    n_blk = H // tile_h
    thw = tile_h * W

    # Fold BN (inference semantics) into the conv: y = convT(x)*s + ((b - mean)*s + beta).
    s = gamma / jnp.sqrt(var + eps)                            # (Cout,)
    bias_fold = (b - mean) * s + beta                          # (Cout,)

    # (9, Cout, Cin) bf16, k = kh*3 + kw, BN scale folded per output channel.
    w_taps = jnp.stack(
        [w[:, :, kh, kw].T * s[:, None] for kh in range(3) for kw in range(3)],
        axis=0).astype(jnp.bfloat16)
    # Lane-dense bias block (value replicated across 128 lanes).
    b_big = jnp.tile(bias_fold[:, None], (1, 128)).astype(jnp.float32)

    # Input stays f32 (cast to bf16 inside the kernel); NCHW -> (N, Cin, H*W) is free.
    x_flat = x_nchw.reshape(N, Cin, H * W)

    # 1-row halo per tile: the input row right below each tile (zeros for the last tile).
    below = x_nchw[:, :, tile_h::tile_h, :]                    # (N, Cin, n_blk-1, W)
    below = jnp.concatenate([below, jnp.zeros((N, Cin, 1, W), x_nchw.dtype)], axis=2)
    halo = below.transpose(0, 2, 1, 3)                         # (N, n_blk, Cin, W)

    kernel = functools.partial(
        _upsampler_kernel, tile_h=tile_h, width=W, low_first=_u32_low_half_first())

    cost = pl.CostEstimate(
        flops=2 * 9 * N * Cout * Cin * H * W,
        transcendentals=0,
        bytes_accessed=(x_flat.size * 4 + halo.size * 4 + w_taps.size * 2
                        + b_big.size * 4 + N * Cout * 2 * H * W * 4),
    )

    out_u32 = pl.pallas_call(
        kernel,
        out_shape=jax.ShapeDtypeStruct((N, Cout, 2 * H * W), jnp.uint32),
        grid_spec=pltpu.PrefetchScalarGridSpec(
            num_scalar_prefetch=0,
            grid=(N, n_blk),
            in_specs=[
                pl.BlockSpec((1, Cin, thw), lambda n, i: (n, 0, i)),       # input row slab
                pl.BlockSpec((1, 1, Cin, W), lambda n, i: (n, i, 0, 0)),   # 1-row halo
                pl.BlockSpec((9, Cout, Cin), lambda n, i: (0, 0, 0)),      # folded weights
                pl.BlockSpec((Cout, 128), lambda n, i: (0, 0)),            # folded bias
            ],
            out_specs=pl.BlockSpec((1, Cout, 2 * thw), lambda n, i: (n, 0, i)),
        ),
        compiler_params=pltpu.CompilerParams(
            dimension_semantics=("parallel", "parallel"),
            vmem_limit_bytes=48 * 1024 * 1024,
        ),
        cost_estimate=cost,
    )(x_flat, halo, w_taps, b_big)

    # Metadata-only epilogue: each uint32 lane holds two adjacent bf16 output columns,
    # and output rows are already interleaved -> reshape + bitcast, no transpose pass.
    out = jax.lax.bitcast_convert_type(
        out_u32.reshape(N, Cout, 2 * H, W), jnp.bfloat16)      # (N, Cout, 2H, W, 2)
    return out.reshape(N, Cout, 2 * H, 2 * W)


def _reference_forward(x, params, eps=1e-3):
    """Pure-JAX reference mirroring the PyTorch forward (eval-mode BN)."""
    w = jnp.asarray(params["conv_w"], jnp.float32)             # (Cin, Cout, 3, 3)
    b = jnp.asarray(params["conv_b"], jnp.float32)
    # ConvTranspose2d(k=3, s=2, p=1, op=1) == dilated conv with flipped kernel.
    w_conv = jnp.flip(w, axis=(2, 3)).transpose(1, 0, 2, 3)    # (Cout, Cin, 3, 3) OIHW
    y = jax.lax.conv_general_dilated(
        x, w_conv, window_strides=(1, 1),
        padding=[(1, 2), (1, 2)],                              # (k-1-p, k-1-p+output_padding)
        lhs_dilation=(2, 2),
        dimension_numbers=("NCHW", "OIHW", "NCHW"),
        precision=jax.lax.Precision.HIGHEST)
    y = y + b.reshape(1, -1, 1, 1)
    s = params["bn_gamma"] / jnp.sqrt(params["bn_var"] + eps)
    y = (y - params["bn_mean"].reshape(1, -1, 1, 1)) * s.reshape(1, -1, 1, 1) \
        + params["bn_beta"].reshape(1, -1, 1, 1)
    return jnp.maximum(y, 0.0)


if __name__ == "__main__":
    key = jax.random.PRNGKey(0)
    N, Cin, Cout, H, W = 2, 4, 8, 16, 16

    ks = jax.random.split(key, 7)
    x = jax.random.normal(ks[0], (N, Cin, H, W), jnp.float32)
    params = {
        "conv_w": 0.2 * jax.random.normal(ks[1], (Cin, Cout, 3, 3), jnp.float32),
        "conv_b": 0.1 * jax.random.normal(ks[2], (Cout,), jnp.float32),
        "bn_gamma": 1.0 + 0.1 * jax.random.normal(ks[3], (Cout,), jnp.float32),
        "bn_beta": 0.1 * jax.random.normal(ks[4], (Cout,), jnp.float32),
        "bn_mean": 0.1 * jax.random.normal(ks[5], (Cout,), jnp.float32),
        "bn_var": 1.0 + 0.1 * jnp.abs(jax.random.normal(ks[6], (Cout,), jnp.float32)),
    }

    # Main check: 2 row-tiles per image (exercises the halo path).
    out = jax.block_until_ready(upsampler_block_forward(x, params, tile_h=8))
    assert out.shape == (N, Cout, 2 * H, 2 * W)
    ref = jax.block_until_ready(_reference_forward(x, params))
    out_f32 = out.astype(jnp.float32)
    max_diff = float(jnp.max(jnp.abs(out_f32 - ref)))
    assert jnp.allclose(out_f32, ref, rtol=2e-2, atol=2e-2), f"max abs diff {max_diff}"

    # Secondary check: non-square spatial shape, different tile size.
    x2 = jax.random.normal(ks[1], (1, Cin, 8, 32), jnp.float32)
    out2 = jax.block_until_ready(upsampler_block_forward(x2, params, tile_h=4))
    ref2 = jax.block_until_ready(_reference_forward(x2, params))
    max_diff2 = float(jnp.max(jnp.abs(out2.astype(jnp.float32) - ref2)))
    assert jnp.allclose(out2.astype(jnp.float32), ref2, rtol=2e-2, atol=2e-2), \
        f"max abs diff {max_diff2}"

    print("KERNEL_OK")
</pallas_src>

<mosaic_0001>
module attributes {stable_mosaic.version = 11 : i64} {
  func.func @_upsampler_kernel(%arg0: i32, %arg1: i32, %arg2: memref<1x4x128xf32, #tpu.memory_space<vmem>>, %arg3: memref<1x1x4x16xf32, #tpu.memory_space<vmem>>, %arg4: memref<9x8x4xbf16, #tpu.memory_space<vmem>>, %arg5: memref<8x128xf32, #tpu.memory_space<vmem>>, %arg6: memref<1x8x256xi32, #tpu.memory_space<vmem>>) attributes {dimension_semantics = [#tpu.dimension_semantics<parallel>, #tpu.dimension_semantics<parallel>], iteration_bounds = array<i64: 2, 2>, scalar_prefetch = 0 : i64, scratch_operands = 0 : i64, tpu.core_type = #tpu.core_type<tc>, window_params = [{transform_indices = @transform_0, window_bounds = array<i64: 1, 4, 128>}, {transform_indices = @transform_1, window_bounds = array<i64: 1, 1, 4, 16>}, {pipeline_mode = #tpu.pipeline_mode<synchronous>, transform_indices = @transform_2, window_bounds = array<i64: 9, 8, 4>}, {pipeline_mode = #tpu.pipeline_mode<synchronous>, transform_indices = @transform_3, window_bounds = array<i64: 8, 128>}, {transform_indices = @transform_4, window_bounds = array<i64: 1, 8, 256>}]} {
    %c0 = arith.constant 0 : index
    %c0_0 = arith.constant 0 : index
    %c0_1 = arith.constant 0 : index
    %0 = vector.load %arg2[%c0, %c0_0, %c0_1] : memref<1x4x128xf32, #tpu.memory_space<vmem>>, vector<1x4x128xf32>
    %1 = vector.shape_cast %0 : vector<1x4x128xf32> to vector<4x128xf32>
    %2 = arith.truncf %1 : vector<4x128xf32> to vector<4x128xbf16>
    %c0_2 = arith.constant 0 : index
    %c0_3 = arith.constant 0 : index
    %c0_4 = arith.constant 0 : index
    %c0_5 = arith.constant 0 : index
    %3 = vector.load %arg3[%c0_2, %c0_3, %c0_4, %c0_5] : memref<1x1x4x16xf32, #tpu.memory_space<vmem>>, vector<1x1x4x16xf32>
    %4 = vector.shape_cast %3 : vector<1x1x4x16xf32> to vector<4x16xf32>
    %5 = arith.truncf %4 : vector<4x16xf32> to vector<4x16xbf16>
    %6 = tpu.iota {dimensions = array<i32: 1>} : vector<1x128xi32>
    %c16_i32 = arith.constant 16 : i32
    %c0_i32 = arith.constant 0 : i32
    %7 = arith.cmpi eq, %c16_i32, %c0_i32 : i32
    %c1_i32 = arith.constant 1 : i32
    %8 = arith.select %7, %c1_i32, %c16_i32 : i32
    %9 = vector.broadcast %8 : i32 to vector<1x128xi32>
    %10 = arith.remsi %6, %9 : vector<1x128xi32>
    %c0_i32_6 = arith.constant 0 : i32
    %11 = vector.broadcast %c0_i32_6 : i32 to vector<1x128xi32>
    %12 = arith.cmpi ne, %10, %11 : vector<1x128xi32>
    %c0_i32_7 = arith.constant 0 : i32
    %13 = vector.broadcast %c0_i32_7 : i32 to vector<1x128xi32>
    %14 = arith.cmpi slt, %10, %13 : vector<1x128xi32>
    %c0_i32_8 = arith.constant 0 : i32
    %15 = arith.cmpi slt, %8, %c0_i32_8 : i32
    %16 = vector.broadcast %15 : i1 to vector<1x128xi1>
    %17 = vector.broadcast %16 : vector<1x128xi1> to vector<1x128xi1>
    %18 = arith.xori %14, %17 : vector<1x128xi1>
    %19 = arith.andi %18, %12 : vector<1x128xi1>
    %20 = vector.broadcast %8 : i32 to vector<1x128xi32>
    %21 = arith.addi %10, %20 : vector<1x128xi32>
    %22 = arith.select %19, %21, %10 : vector<1x128xi1>, vector<1x128xi32>
    %c15_i32 = arith.constant 15 : i32
    %23 = vector.broadcast %c15_i32 : i32 to vector<1x128xi32>
    %24 = arith.cmpi slt, %22, %23 : vector<1x128xi32>
    %25 = vector.extract_strided_slice %2 {offsets = [0, 1], sizes = [4, 127], strides = [1, 1]} : vector<4x128xbf16> to vector<4x127xbf16>
    %26 = vector.extract_strided_slice %2 {offsets = [0, 0], sizes = [4, 1], strides = [1, 1]} : vector<4x128xbf16> to vector<4x1xbf16>
    %27 = tpu.concatenate %25, %26 in 1 : vector<4x127xbf16>, vector<4x1xbf16> -> vector<4x128xbf16>
    %c0_i32_9 = arith.constant 0 : i32
    %28 = arith.sitofp %c0_i32_9 : i32 to bf16
    %29 = vector.shape_cast %24 : vector<1x128xi1> to vector<1x128xi1>
    %30 = vector.broadcast %29 : vector<1x128xi1> to vector<4x128xi1>
    %31 = vector.broadcast %28 : bf16 to vector<4x128xbf16>
    %32 = arith.select %30, %27, %31 : vector<4x128xi1>, vector<4x128xbf16>
    %33 = vector.extract_strided_slice %2 {offsets = [0, 16], sizes = [4, 112], strides = [1, 1]} : vector<4x128xbf16> to vector<4x112xbf16>
    %34 = tpu.concatenate %33, %5 in 1 : vector<4x112xbf16>, vector<4x16xbf16> -> vector<4x128xbf16>
    %35 = vector.extract_strided_slice %34 {offsets = [0, 1], sizes = [4, 127], strides = [1, 1]} : vector<4x128xbf16> to vector<4x127xbf16>
    %36 = vector.extract_strided_slice %34 {offsets = [0, 0], sizes = [4, 1], strides = [1, 1]} : vector<4x128xbf16> to vector<4x1xbf16>
    %37 = tpu.concatenate %35, %36 in 1 : vector<4x127xbf16>, vector<4x1xbf16> -> vector<4x128xbf16>
    %c0_i32_10 = arith.constant 0 : i32
    %38 = arith.sitofp %c0_i32_10 : i32 to bf16
    %39 = vector.shape_cast %24 : vector<1x128xi1> to vector<1x128xi1>
    %40 = vector.broadcast %39 : vector<1x128xi1> to vector<4x128xi1>
    %41 = vector.broadcast %38 : bf16 to vector<4x128xbf16>
    %42 = arith.select %40, %37, %41 : vector<4x128xi1>, vector<4x128xbf16>
    %c4 = arith.constant 4 : index
    %c0_11 = arith.constant 0 : index
    %c0_12 = arith.constant 0 : index
    %43 = vector.load %arg4[%c4, %c0_11, %c0_12] : memref<9x8x4xbf16, #tpu.memory_space<vmem>>, vector<1x8x4xbf16>
    %44 = vector.shape_cast %43 : vector<1x8x4xbf16> to vector<8x4xbf16>
    %cst = arith.constant dense<0.000000e+00> : vector<8x128xf32>
    %45 = tpu.matmul %44, %2, %cst {dimension_numbers = #tpu.dot_dimension_numbers<[1], [0], [0], [1], [0, 0, 1, 1], [], []>} : vector<8x4xbf16>, vector<4x128xbf16>, vector<8x128xf32> -> vector<8x128xf32>
    %c5 = arith.constant 5 : index
    %c0_13 = arith.constant 0 : index
    %c0_14 = arith.constant 0 : index
    %46 = vector.load %arg4[%c5, %c0_13, %c0_14] : memref<9x8x4xbf16, #tpu.memory_space<vmem>>, vector<1x8x4xbf16>
    %47 = vector.shape_cast %46 : vector<1x8x4xbf16> to vector<8x4xbf16>
    %cst_15 = arith.constant dense<0.000000e+00> : vector<8x128xf32>
    %48 = tpu.matmul %47, %2, %cst_15 {dimension_numbers = #tpu.dot_dimension_numbers<[1], [0], [0], [1], [0, 0, 1, 1], [], []>} : vector<8x4xbf16>, vector<4x128xbf16>, vector<8x128xf32> -> vector<8x128xf32>
    %c3 = arith.constant 3 : index
    %c0_16 = arith.constant 0 : index
    %c0_17 = arith.constant 0 : index
    %49 = vector.load %arg4[%c3, %c0_16, %c0_17] : memref<9x8x4xbf16, #tpu.memory_space<vmem>>, vector<1x8x4xbf16>
    %50 = vector.shape_cast %49 : vector<1x8x4xbf16> to vector<8x4xbf16>
    %cst_18 = arith.constant dense<0.000000e+00> : vector<8x128xf32>
    %51 = tpu.matmul %50, %32, %cst_18 {dimension_numbers = #tpu.dot_dimension_numbers<[1], [0], [0], [1], [0, 0, 1, 1], [], []>} : vector<8x4xbf16>, vector<4x128xbf16>, vector<8x128xf32> -> vector<8x128xf32>
    %52 = arith.addf %48, %51 : vector<8x128xf32>
    %c7 = arith.constant 7 : index
    %c0_19 = arith.constant 0 : index
    %c0_20 = arith.constant 0 : index
    %53 = vector.load %arg4[%c7, %c0_19, %c0_20] : memref<9x8x4xbf16, #tpu.memory_space<vmem>>, vector<1x8x4xbf16>
    %54 = vector.shape_cast %53 : vector<1x8x4xbf16> to vector<8x4xbf16>
    %cst_21 = arith.constant dense<0.000000e+00> : vector<8x128xf32>
    %55 = tpu.matmul %54, %2, %cst_21 {dimension_numbers = #tpu.dot_dimension_numbers<[1], [0], [0], [1], [0, 0, 1, 1], [], []>} : vector<8x4xbf16>, vector<4x128xbf16>, vector<8x128xf32> -> vector<8x128xf32>
    %c1 = arith.constant 1 : index
    %c0_22 = arith.constant 0 : index
    %c0_23 = arith.constant 0 : index
    %56 = vector.load %arg4[%c1, %c0_22, %c0_23] : memref<9x8x4xbf16, #tpu.memory_space<vmem>>, vector<1x8x4xbf16>
    %57 = vector.shape_cast %56 : vector<1x8x4xbf16> to vector<8x4xbf16>
    %cst_24 = arith.constant dense<0.000000e+00> : vector<8x128xf32>
    %58 = tpu.matmul %57, %34, %cst_24 {dimension_numbers = #tpu.dot_dimension_numbers<[1], [0], [0], [1], [0, 0, 1, 1], [], []>} : vector<8x4xbf16>, vector<4x128xbf16>, vector<8x128xf32> -> vector<8x128xf32>
    %59 = arith.addf %55, %58 : vector<8x128xf32>
    %c8 = arith.constant 8 : index
    %c0_25 = arith.constant 0 : index
    %c0_26 = arith.constant 0 : index
    %60 = vector.load %arg4[%c8, %c0_25, %c0_26] : memref<9x8x4xbf16, #tpu.memory_space<vmem>>, vector<1x8x4xbf16>
    %61 = vector.shape_cast %60 : vector<1x8x4xbf16> to vector<8x4xbf16>
    %cst_27 = arith.constant dense<0.000000e+00> : vector<8x128xf32>
    %62 = tpu.matmul %61, %2, %cst_27 {dimension_numbers = #tpu.dot_dimension_numbers<[1], [0], [0], [1], [0, 0, 1, 1], [], []>} : vector<8x4xbf16>, vector<4x128xbf16>, vector<8x128xf32> -> vector<8x128xf32>
    %c6 = arith.constant 6 : index
    %c0_28 = arith.constant 0 : index
    %c0_29 = arith.constant 0 : index
    %63 = vector.load %arg4[%c6, %c0_28, %c0_29] : memref<9x8x4xbf16, #tpu.memory_space<vmem>>, vector<1x8x4xbf16>
    %64 = vector.shape_cast %63 : vector<1x8x4xbf16> to vector<8x4xbf16>
    %cst_30 = arith.constant dense<0.000000e+00> : vector<8x128xf32>
    %65 = tpu.matmul %64, %32, %cst_30 {dimension_numbers = #tpu.dot_dimension_numbers<[1], [0], [0], [1], [0, 0, 1, 1], [], []>} : vector<8x4xbf16>, vector<4x128xbf16>, vector<8x128xf32> -> vector<8x128xf32>
    %66 = arith.addf %62, %65 : vector<8x128xf32>
    %c2 = arith.constant 2 : index
    %c0_31 = arith.constant 0 : index
    %c0_32 = arith.constant 0 : index
    %67 = vector.load %arg4[%c2, %c0_31, %c0_32] : memref<9x8x4xbf16, #tpu.memory_space<vmem>>, vector<1x8x4xbf16>
    %68 = vector.shape_cast %67 : vector<1x8x4xbf16> to vector<8x4xbf16>
    %cst_33 = arith.constant dense<0.000000e+00> : vector<8x128xf32>
    %69 = tpu.matmul %68, %34, %cst_33 {dimension_numbers = #tpu.dot_dimension_numbers<[1], [0], [0], [1], [0, 0, 1, 1], [], []>} : vector<8x4xbf16>, vector<4x128xbf16>, vector<8x128xf32> -> vector<8x128xf32>
    %70 = arith.addf %66, %69 : vector<8x128xf32>
    %c0_34 = arith.constant 0 : index
    %c0_35 = arith.constant 0 : index
    %c0_36 = arith.constant 0 : index
    %71 = vector.load %arg4[%c0_34, %c0_35, %c0_36] : memref<9x8x4xbf16, #tpu.memory_space<vmem>>, vector<1x8x4xbf16>
    %72 = vector.shape_cast %71 : vector<1x8x4xbf16> to vector<8x4xbf16>
    %cst_37 = arith.constant dense<0.000000e+00> : vector<8x128xf32>
    %73 = tpu.matmul %72, %42, %cst_37 {dimension_numbers = #tpu.dot_dimension_numbers<[1], [0], [0], [1], [0, 0, 1, 1], [], []>} : vector<8x4xbf16>, vector<4x128xbf16>, vector<8x128xf32> -> vector<8x128xf32>
    %74 = arith.addf %70, %73 : vector<8x128xf32>
    %c0_38 = arith.constant 0 : index
    %c0_39 = arith.constant 0 : index
    %75 = vector.load %arg5[%c0_38, %c0_39] : memref<8x128xf32, #tpu.memory_space<vmem>>, vector<8x128xf32>
    %76 = vector.extract_strided_slice %75 {offsets = [0, 0], sizes = [8, 1], strides = [1, 1]} : vector<8x128xf32> to vector<8x1xf32>
    %77 = vector.broadcast %76 : vector<8x1xf32> to vector<8x128xf32>
    %78 = arith.addf %45, %77 : vector<8x128xf32>
    %cst_40 = arith.constant 0.000000e+00 : f32
    %79 = vector.broadcast %cst_40 : f32 to vector<8x128xf32>
    %80 = arith.maximumf %78, %79 : vector<8x128xf32>
    %81 = tpu.bitcast %80 : vector<8x128xf32> -> vector<8x128xi32>
    %c32767_i32 = arith.constant 32767 : i32
    %82 = vector.broadcast %c32767_i32 : i32 to vector<8x128xi32>
    %83 = arith.addi %81, %82 : vector<8x128xi32>
    %c16_i32_41 = arith.constant 16 : i32
    %84 = vector.broadcast %c16_i32_41 : i32 to vector<8x128xi32>
    %85 = arith.shrui %81, %84 : vector<8x128xi32>
    %c1_i32_42 = arith.constant 1 : i32
    %86 = vector.broadcast %c1_i32_42 : i32 to vector<8x128xi32>
    %87 = arith.andi %85, %86 : vector<8x128xi32>
    %88 = arith.addi %83, %87 : vector<8x128xi32>
    %c16_i32_43 = arith.constant 16 : i32
    %89 = vector.broadcast %c16_i32_43 : i32 to vector<8x128xi32>
    %90 = arith.shrui %88, %89 : vector<8x128xi32>
    %91 = vector.broadcast %76 : vector<8x1xf32> to vector<8x128xf32>
    %92 = arith.addf %52, %91 : vector<8x128xf32>
    %cst_44 = arith.constant 0.000000e+00 : f32
    %93 = vector.broadcast %cst_44 : f32 to vector<8x128xf32>
    %94 = arith.maximumf %92, %93 : vector<8x128xf32>
    %95 = tpu.bitcast %94 : vector<8x128xf32> -> vector<8x128xi32>
    %c32767_i32_45 = arith.constant 32767 : i32
    %96 = vector.broadcast %c32767_i32_45 : i32 to vector<8x128xi32>
    %97 = arith.addi %95, %96 : vector<8x128xi32>
    %c16_i32_46 = arith.constant 16 : i32
    %98 = vector.broadcast %c16_i32_46 : i32 to vector<8x128xi32>
    %99 = arith.shrui %95, %98 : vector<8x128xi32>
    %c1_i32_47 = arith.constant 1 : i32
    %100 = vector.broadcast %c1_i32_47 : i32 to vector<8x128xi32>
    %101 = arith.andi %99, %100 : vector<8x128xi32>
    %102 = arith.addi %97, %101 : vector<8x128xi32>
    %c16_i32_48 = arith.constant 16 : i32
    %103 = vector.broadcast %c16_i32_48 : i32 to vector<8x128xi32>
    %104 = arith.shrui %102, %103 : vector<8x128xi32>
    %105 = vector.broadcast %76 : vector<8x1xf32> to vector<8x128xf32>
    %106 = arith.addf %59, %105 : vector<8x128xf32>
    %cst_49 = arith.constant 0.000000e+00 : f32
    %107 = vector.broadcast %cst_49 : f32 to vector<8x128xf32>
    %108 = arith.maximumf %106, %107 : vector<8x128xf32>
    %109 = tpu.bitcast %108 : vector<8x128xf32> -> vector<8x128xi32>
    %c32767_i32_50 = arith.constant 32767 : i32
    %110 = vector.broadcast %c32767_i32_50 : i32 to vector<8x128xi32>
    %111 = arith.addi %109, %110 : vector<8x128xi32>
    %c16_i32_51 = arith.constant 16 : i32
    %112 = vector.broadcast %c16_i32_51 : i32 to vector<8x128xi32>
    %113 = arith.shrui %109, %112 : vector<8x128xi32>
    %c1_i32_52 = arith.constant 1 : i32
    %114 = vector.broadcast %c1_i32_52 : i32 to vector<8x128xi32>
    %115 = arith.andi %113, %114 : vector<8x128xi32>
    %116 = arith.addi %111, %115 : vector<8x128xi32>
    %c16_i32_53 = arith.constant 16 : i32
    %117 = vector.broadcast %c16_i32_53 : i32 to vector<8x128xi32>
    %118 = arith.shrui %116, %117 : vector<8x128xi32>
    %119 = vector.broadcast %76 : vector<8x1xf32> to vector<8x128xf32>
    %120 = arith.addf %74, %119 : vector<8x128xf32>
    %cst_54 = arith.constant 0.000000e+00 : f32
    %121 = vector.broadcast %cst_54 : f32 to vector<8x128xf32>
    %122 = arith.maximumf %120, %121 : vector<8x128xf32>
    %123 = tpu.bitcast %122 : vector<8x128xf32> -> vector<8x128xi32>
    %c32767_i32_55 = arith.constant 32767 : i32
    %124 = vector.broadcast %c32767_i32_55 : i32 to vector<8x128xi32>
    %125 = arith.addi %123, %124 : vector<8x128xi32>
    %c16_i32_56 = arith.constant 16 : i32
    %126 = vector.broadcast %c16_i32_56 : i32 to vector<8x128xi32>
    %127 = arith.shrui %123, %126 : vector<8x128xi32>
    %c1_i32_57 = arith.constant 1 : i32
    %128 = vector.broadcast %c1_i32_57 : i32 to vector<8x128xi32>
    %129 = arith.andi %127, %128 : vector<8x128xi32>
    %130 = arith.addi %125, %129 : vector<8x128xi32>
    %c16_i32_58 = arith.constant 16 : i32
    %131 = vector.broadcast %c16_i32_58 : i32 to vector<8x128xi32>
    %132 = arith.shrui %130, %131 : vector<8x128xi32>
    %c16_i32_59 = arith.constant 16 : i32
    %133 = vector.broadcast %c16_i32_59 : i32 to vector<8x128xi32>
    %134 = arith.shli %104, %133 : vector<8x128xi32>
    %135 = arith.ori %90, %134 : vector<8x128xi32>
    %c16_i32_60 = arith.constant 16 : i32
    %136 = vector.broadcast %c16_i32_60 : i32 to vector<8x128xi32>
    %137 = arith.shli %132, %136 : vector<8x128xi32>
    %138 = arith.ori %118, %137 : vector<8x128xi32>
    %139 = vector.extract_strided_slice %135 {offsets = [0, 0], sizes = [8, 16], strides = [1, 1]} : vector<8x128xi32> to vector<8x16xi32>
    %c0_61 = arith.constant 0 : index
    %c0_62 = arith.constant 0 : index
    %c0_63 = arith.constant 0 : index
    %140 = vector.load %arg6[%c0_61, %c0_62, %c0_63] : memref<1x8x256xi32, #tpu.memory_space<vmem>>, vector<1x8x16xi32>
    %141 = vector.shape_cast %140 : vector<1x8x16xi32> to vector<8x16xi32>
    %142 = vector.shape_cast %139 : vector<8x16xi32> to vector<1x8x16xi32>
    tpu.vector_store %arg6[%c0_61, %c0_62, %c0_63], %142 {strides = array<i32>} : memref<1x8x256xi32, #tpu.memory_space<vmem>>, vector<1x8x16xi32>,
    %143 = vector.extract_strided_slice %138 {offsets = [0, 0], sizes = [8, 16], strides = [1, 1]} : vector<8x128xi32> to vector<8x16xi32>
    %c0_64 = arith.constant 0 : index
    %c0_65 = arith.constant 0 : index
    %c16 = arith.constant 16 : index
    %144 = vector.load %arg6[%c0_64, %c0_65, %c16] : memref<1x8x256xi32, #tpu.memory_space<vmem>>, vector<1x8x16xi32>
    %145 = vector.shape_cast %144 : vector<1x8x16xi32> to vector<8x16xi32>
    %146 = vector.shape_cast %143 : vector<8x16xi32> to vector<1x8x16xi32>
    tpu.vector_store %arg6[%c0_64, %c0_65, %c16], %146 {strides = array<i32>} : memref<1x8x256xi32, #tpu.memory_space<vmem>>, vector<1x8x16xi32>,
    %147 = vector.extract_strided_slice %135 {offsets = [0, 16], sizes = [8, 16], strides = [1, 1]} : vector<8x128xi32> to vector<8x16xi32>
    %c0_66 = arith.constant 0 : index
    %c0_67 = arith.constant 0 : index
    %c32 = arith.constant 32 : index
    %148 = vector.load %arg6[%c0_66, %c0_67, %c32] : memref<1x8x256xi32, #tpu.memory_space<vmem>>, vector<1x8x16xi32>
    %149 = vector.shape_cast %148 : vector<1x8x16xi32> to vector<8x16xi32>
    %150 = vector.shape_cast %147 : vector<8x16xi32> to vector<1x8x16xi32>
    tpu.vector_store %arg6[%c0_66, %c0_67, %c32], %150 {strides = array<i32>} : memref<1x8x256xi32, #tpu.memory_space<vmem>>, vector<1x8x16xi32>,
    %151 = vector.extract_strided_slice %138 {offsets = [0, 16], sizes = [8, 16], strides = [1, 1]} : vector<8x128xi32> to vector<8x16xi32>
    %c0_68 = arith.constant 0 : index
    %c0_69 = arith.constant 0 : index
    %c48 = arith.constant 48 : index
    %152 = vector.load %arg6[%c0_68, %c0_69, %c48] : memref<1x8x256xi32, #tpu.memory_space<vmem>>, vector<1x8x16xi32>
    %153 = vector.shape_cast %152 : vector<1x8x16xi32> to vector<8x16xi32>
    %154 = vector.shape_cast %151 : vector<8x16xi32> to vector<1x8x16xi32>
    tpu.vector_store %arg6[%c0_68, %c0_69, %c48], %154 {strides = array<i32>} : memref<1x8x256xi32, #tpu.memory_space<vmem>>, vector<1x8x16xi32>,
    %155 = vector.extract_strided_slice %135 {offsets = [0, 32], sizes = [8, 16], strides = [1, 1]} : vector<8x128xi32> to vector<8x16xi32>
    %c0_70 = arith.constant 0 : index
    %c0_71 = arith.constant 0 : index
    %c64 = arith.constant 64 : index
    %156 = vector.load %arg6[%c0_70, %c0_71, %c64] : memref<1x8x256xi32, #tpu.memory_space<vmem>>, vector<1x8x16xi32>
    %157 = vector.shape_cast %156 : vector<1x8x16xi32> to vector<8x16xi32>
    %158 = vector.shape_cast %155 : vector<8x16xi32> to vector<1x8x16xi32>
    tpu.vector_store %arg6[%c0_70, %c0_71, %c64], %158 {strides = array<i32>} : memref<1x8x256xi32, #tpu.memory_space<vmem>>, vector<1x8x16xi32>,
    %159 = vector.extract_strided_slice %138 {offsets = [0, 32], sizes = [8, 16], strides = [1, 1]} : vector<8x128xi32> to vector<8x16xi32>
    %c0_72 = arith.constant 0 : index
    %c0_73 = arith.constant 0 : index
    %c80 = arith.constant 80 : index
    %160 = vector.load %arg6[%c0_72, %c0_73, %c80] : memref<1x8x256xi32, #tpu.memory_space<vmem>>, vector<1x8x16xi32>
    %161 = vector.shape_cast %160 : vector<1x8x16xi32> to vector<8x16xi32>
    %162 = vector.shape_cast %159 : vector<8x16xi32> to vector<1x8x16xi32>
    tpu.vector_store %arg6[%c0_72, %c0_73, %c80], %162 {strides = array<i32>} : memref<1x8x256xi32, #tpu.memory_space<vmem>>, vector<1x8x16xi32>,
    %163 = vector.extract_strided_slice %135 {offsets = [0, 48], sizes = [8, 16], strides = [1, 1]} : vector<8x128xi32> to vector<8x16xi32>
    %c0_74 = arith.constant 0 : index
    %c0_75 = arith.constant 0 : index
    %c96 = arith.constant 96 : index
    %164 = vector.load %arg6[%c0_74, %c0_75, %c96] : memref<1x8x256xi32, #tpu.memory_space<vmem>>, vector<1x8x16xi32>
    %165 = vector.shape_cast %164 : vector<1x8x16xi32> to vector<8x16xi32>
    %166 = vector.shape_cast %163 : vector<8x16xi32> to vector<1x8x16xi32>
    tpu.vector_store %arg6[%c0_74, %c0_75, %c96], %166 {strides = array<i32>} : memref<1x8x256xi32, #tpu.memory_space<vmem>>, vector<1x8x16xi32>,
    %167 = vector.extract_strided_slice %138 {offsets = [0, 48], sizes = [8, 16], strides = [1, 1]} : vector<8x128xi32> to vector<8x16xi32>
    %c0_76 = arith.constant 0 : index
    %c0_77 = arith.constant 0 : index
    %c112 = arith.constant 112 : index
    %168 = vector.load %arg6[%c0_76, %c0_77, %c112] : memref<1x8x256xi32, #tpu.memory_space<vmem>>, vector<1x8x16xi32>
    %169 = vector.shape_cast %168 : vector<1x8x16xi32> to vector<8x16xi32>
    %170 = vector.shape_cast %167 : vector<8x16xi32> to vector<1x8x16xi32>
    tpu.vector_store %arg6[%c0_76, %c0_77, %c112], %170 {strides = array<i32>} : memref<1x8x256xi32, #tpu.memory_space<vmem>>, vector<1x8x16xi32>,
    %171 = vector.extract_strided_slice %135 {offsets = [0, 64], sizes = [8, 16], strides = [1, 1]} : vector<8x128xi32> to vector<8x16xi32>
    %c0_78 = arith.constant 0 : index
    %c0_79 = arith.constant 0 : index
    %c128 = arith.constant 128 : index
    %172 = vector.load %arg6[%c0_78, %c0_79, %c128] : memref<1x8x256xi32, #tpu.memory_space<vmem>>, vector<1x8x16xi32>
    %173 = vector.shape_cast %172 : vector<1x8x16xi32> to vector<8x16xi32>
    %174 = vector.shape_cast %171 : vector<8x16xi32> to vector<1x8x16xi32>
    tpu.vector_store %arg6[%c0_78, %c0_79, %c128], %174 {strides = array<i32>} : memref<1x8x256xi32, #tpu.memory_space<vmem>>, vector<1x8x16xi32>,
    %175 = vector.extract_strided_slice %138 {offsets = [0, 64], sizes = [8, 16], strides = [1, 1]} : vector<8x128xi32> to vector<8x16xi32>
    %c0_80 = arith.constant 0 : index
    %c0_81 = arith.constant 0 : index
    %c144 = arith.constant 144 : index
    %176 = vector.load %arg6[%c0_80, %c0_81, %c144] : memref<1x8x256xi32, #tpu.memory_space<vmem>>, vector<1x8x16xi32>
    %177 = vector.shape_cast %176 : vector<1x8x16xi32> to vector<8x16xi32>
    %178 = vector.shape_cast %175 : vector<8x16xi32> to vector<1x8x16xi32>
    tpu.vector_store %arg6[%c0_80, %c0_81, %c144], %178 {strides = array<i32>} : memref<1x8x256xi32, #tpu.memory_space<vmem>>, vector<1x8x16xi32>,
    %179 = vector.extract_strided_slice %135 {offsets = [0, 80], sizes = [8, 16], strides = [1, 1]} : vector<8x128xi32> to vector<8x16xi32>
    %c0_82 = arith.constant 0 : index
    %c0_83 = arith.constant 0 : index
    %c160 = arith.constant 160 : index
    %180 = vector.load %arg6[%c0_82, %c0_83, %c160] : memref<1x8x256xi32, #tpu.memory_space<vmem>>, vector<1x8x16xi32>
    %181 = vector.shape_cast %180 : vector<1x8x16xi32> to vector<8x16xi32>
    %182 = vector.shape_cast %179 : vector<8x16xi32> to vector<1x8x16xi32>
    tpu.vector_store %arg6[%c0_82, %c0_83, %c160], %182 {strides = array<i32>} : memref<1x8x256xi32, #tpu.memory_space<vmem>>, vector<1x8x16xi32>,
    %183 = vector.extract_strided_slice %138 {offsets = [0, 80], sizes = [8, 16], strides = [1, 1]} : vector<8x128xi32> to vector<8x16xi32>
    %c0_84 = arith.constant 0 : index
    %c0_85 = arith.constant 0 : index
    %c176 = arith.constant 176 : index
    %184 = vector.load %arg6[%c0_84, %c0_85, %c176] : memref<1x8x256xi32, #tpu.memory_space<vmem>>, vector<1x8x16xi32>
    %185 = vector.shape_cast %184 : vector<1x8x16xi32> to vector<8x16xi32>
    %186 = vector.shape_cast %183 : vector<8x16xi32> to vector<1x8x16xi32>
    tpu.vector_store %arg6[%c0_84, %c0_85, %c176], %186 {strides = array<i32>} : memref<1x8x256xi32, #tpu.memory_space<vmem>>, vector<1x8x16xi32>,
    %187 = vector.extract_strided_slice %135 {offsets = [0, 96], sizes = [8, 16], strides = [1, 1]} : vector<8x128xi32> to vector<8x16xi32>
    %c0_86 = arith.constant 0 : index
    %c0_87 = arith.constant 0 : index
    %c192 = arith.constant 192 : index
    %188 = vector.load %arg6[%c0_86, %c0_87, %c192] : memref<1x8x256xi32, #tpu.memory_space<vmem>>, vector<1x8x16xi32>
    %189 = vector.shape_cast %188 : vector<1x8x16xi32> to vector<8x16xi32>
    %190 = vector.shape_cast %187 : vector<8x16xi32> to vector<1x8x16xi32>
    tpu.vector_store %arg6[%c0_86, %c0_87, %c192], %190 {strides = array<i32>} : memref<1x8x256xi32, #tpu.memory_space<vmem>>, vector<1x8x16xi32>,
    %191 = vector.extract_strided_slice %138 {offsets = [0, 96], sizes = [8, 16], strides = [1, 1]} : vector<8x128xi32> to vector<8x16xi32>
    %c0_88 = arith.constant 0 : index
    %c0_89 = arith.constant 0 : index
    %c208 = arith.constant 208 : index
    %192 = vector.load %arg6[%c0_88, %c0_89, %c208] : memref<1x8x256xi32, #tpu.memory_space<vmem>>, vector<1x8x16xi32>
    %193 = vector.shape_cast %192 : vector<1x8x16xi32> to vector<8x16xi32>
    %194 = vector.shape_cast %191 : vector<8x16xi32> to vector<1x8x16xi32>
    tpu.vector_store %arg6[%c0_88, %c0_89, %c208], %194 {strides = array<i32>} : memref<1x8x256xi32, #tpu.memory_space<vmem>>, vector<1x8x16xi32>,
    %195 = vector.extract_strided_slice %135 {offsets = [0, 112], sizes = [8, 16], strides = [1, 1]} : vector<8x128xi32> to vector<8x16xi32>
    %c0_90 = arith.constant 0 : index
    %c0_91 = arith.constant 0 : index
    %c224 = arith.constant 224 : index
    %196 = vector.load %arg6[%c0_90, %c0_91, %c224] : memref<1x8x256xi32, #tpu.memory_space<vmem>>, vector<1x8x16xi32>
    %197 = vector.shape_cast %196 : vector<1x8x16xi32> to vector<8x16xi32>
    %198 = vector.shape_cast %195 : vector<8x16xi32> to vector<1x8x16xi32>
    tpu.vector_store %arg6[%c0_90, %c0_91, %c224], %198 {strides = array<i32>} : memref<1x8x256xi32, #tpu.memory_space<vmem>>, vector<1x8x16xi32>,
    %199 = vector.extract_strided_slice %138 {offsets = [0, 112], sizes = [8, 16], strides = [1, 1]} : vector<8x128xi32> to vector<8x16xi32>
    %c0_92 = arith.constant 0 : index
    %c0_93 = arith.constant 0 : index
    %c240 = arith.constant 240 : index
    %200 = vector.load %arg6[%c0_92, %c0_93, %c240] : memref<1x8x256xi32, #tpu.memory_space<vmem>>, vector<1x8x16xi32>
    %201 = vector.shape_cast %200 : vector<1x8x16xi32> to vector<8x16xi32>
    %202 = vector.shape_cast %199 : vector<8x16xi32> to vector<1x8x16xi32>
    tpu.vector_store %arg6[%c0_92, %c0_93, %c240], %202 {strides = array<i32>} : memref<1x8x256xi32, #tpu.memory_space<vmem>>, vector<1x8x16xi32>,
    return
  }
  func.func @transform_0(%arg0: i32, %arg1: i32) -> (i32, i32, i32) {
    %c0_i32 = arith.constant 0 : i32
    %c0_i32_0 = arith.constant 0 : i32
    return %arg0, %c0_i32, %arg1 : i32, i32, i32
  }
  func.func @transform_1(%arg0: i32, %arg1: i32) -> (i32, i32, i32, i32) {
    %c0_i32 = arith.constant 0 : i32
    %c0_i32_0 = arith.constant 0 : i32
    %c0_i32_1 = arith.constant 0 : i32
    return %arg0, %arg1, %c0_i32, %c0_i32_0 : i32, i32, i32, i32
  }
  func.func @transform_2(%arg0: i32, %arg1: i32) -> (i32, i32, i32) {
    %c0_i32 = arith.constant 0 : i32
    %c0_i32_0 = arith.constant 0 : i32
    %c0_i32_1 = arith.constant 0 : i32
    %c0_i32_2 = arith.constant 0 : i32
    return %c0_i32, %c0_i32_0, %c0_i32_1 : i32, i32, i32
  }
  func.func @transform_3(%arg0: i32, %arg1: i32) -> (i32, i32) {
    %c0_i32 = arith.constant 0 : i32
    %c0_i32_0 = arith.constant 0 : i32
    %c0_i32_1 = arith.constant 0 : i32
    return %c0_i32, %c0_i32_0 : i32, i32
  }
  func.func @transform_4(%arg0: i32, %arg1: i32) -> (i32, i32, i32) {
    %c0_i32 = arith.constant 0 : i32
    %c0_i32_0 = arith.constant 0 : i32
    return %arg0, %c0_i32, %arg1 : i32, i32, i32
  }
}

</mosaic_0001>

<llo_original>
// kernel: tpu_custom_call.1
$region0: #{tpu_custom_call.1}
  #allocation0 [shape = 'u32[]', space=smem, size = 0x4, offset = 0x4, fixed_abs, tag = 'smem constant byte address 0x4 - core index']
  #allocation1 [shape = 'u32[144,128]{1,0:T(1,128)}', space=vmem, size = 0x12000, scoped, tag = 'internal scratch']
  %s0 = inlined_call_operand.vmem [shape: f32[2,4,256], index: 0, kind: input, shape index: {}]
  %s1 = inlined_call_operand.vmem [shape: f32[2,2,4,16], index: 1, kind: input, shape index: {}]
  %s2 = inlined_call_operand.vmem [shape: bf16[9,8,4], index: 2, kind: input, shape index: {}]
  %s3 = inlined_call_operand.vmem [shape: f32[8,128], index: 3, kind: input, shape index: {}]
  %s4 = inlined_call_operand.hbm [shape: u32[2,8,512], index: 4, kind: output, shape index: {}]
  %s5 = sld [smem:[#allocation0]]
  $region49: #{tpu_custom_call.1} parent=0
    _
  %s7 = ssub.s32 1, %s5
  %s8 = scalar_select 0, %s7, %s5
  $region1: #{tpu_custom_call.1} parent=0
    #allocation2 [shape = 'u8[16384]{0}', space=vmem, size = 0x4000, scoped, tag = 'output window, operand 0']
    #allocation3 [shape = 's32[2]{0}', space=sflag, size = 0x8, scoped, tag = 'scoped memory for tpu_custom_call.1']
    %9 = vsyncpa [#allocation3], 0
    %s10 = scalar_lea.sflag [#allocation3], 1
    %11 = vsyncpa %s10, 0
    loop: start=0, step=1, limit=6
    $region2: #{tpu_custom_call.1} parent=1 // loop_pre_header
      _
    $region3: #{tpu_custom_call.1} parent=1 // loop_header
      %s13 = sphi 0, %s17
      %p14 = scmp.ge.s32.totalorder %s13, 6
      %s20 = sphi 0, %s32
      %s21 = sphi 0, %s28
      %s22 = sphi 0, %s20
      %s23 = sphi 0, %s21
      %s24 = sphi 0, %s22
      %s25 = sphi 0, %s23
      %s37 = sphi 0, %s39
      %s40 = sphi 0, %s37
      %s41 = sphi 0, %s40
      %s57 = sphi 0, %s41
      %s65 = sphi 0, %s67
      %s68 = sphi 0, %s65
      %s69 = sphi 0, %s68
      %s85 = sphi 0, %s69
      %s89 = sphi 0, %s89
      %s91 = sphi 0, %s89
      %s92 = sphi 0, %s91
      %s106 = sphi 0, %s92
      %s110 = sphi 0, %s110
      %s112 = sphi 0, %s110
      %s113 = sphi 0, %s112
      %s127 = sphi 0, %s113
      %s135 = sphi 0, %s137
      %s138 = sphi 0, %s135
      %s139 = sphi 0, %s138
      %s155 = sphi 0, %s139
    $region4: #{tpu_custom_call.1} parent=1 // loop_header_branch
      %16 = sbr.rel (%p14) target = $region8
    $region5: #{tpu_custom_call.1} parent=1 // loop_body
      %s18 = ssub.s32 %s13, 1
      %s19 = ssub.s32 %s13, 2
      %s26 = sadd.s32 1, %s21
      %p27 = scmp.ge.s32.totalorder %s26, 2
      %s28 = scalar_select %p27, 0, %s26
      %s29 = sadd.s32 1, %s20
      %s30 = scalar_select %p27, %s29, %s20
      %p31 = scmp.ge.s32.totalorder %s30, 2
      %s32 = scalar_select %p31, 0, %s30
      %s33 = ssub.s32 %s20, %s32
      %s34 = ssub.s32 %s21, %s28
      %s35 = sor.u32 %s33, %s34
      %p36 = scmp.eq.s32.totalorder %s35, 0
      %s38 = sadd.s32 %s37, 1
      %s39 = scalar_select %p36, %s37, %s38
      %p42 = pneg %p36
      %p43 = scmp.eq.s32.totalorder %s13, 3
      %p44 = por %p42, %p43
      %p45 = scmp.ne.s32.totalorder %s37, %s40
      %p46 = scmp.eq.s32.totalorder %s13, 0
      %p47 = por %p45, %p46
      %p48 = scmp.ne.s32.totalorder %s37, %s40
      %p49 = scmp.eq.s32.totalorder %s18, 3
      %p50 = por %p48, %p49
      %p51 = scmp.ne.s32.totalorder %s40, %s41
      %p52 = scmp.eq.s32.totalorder %s18, 0
      %p53 = por %p51, %p52
      %p54 = scmp.ne.s32.totalorder %s40, %s41
      %p55 = scmp.eq.s32.totalorder %s19, 3
      %p56 = por %p54, %p55
      %p58 = scmp.ne.s32.totalorder %s41, %s57
      %p59 = scmp.eq.s32.totalorder %s19, 0
      %p60 = por %p58, %p59
      %s61 = ssub.s32 %s20, %s32
      %s62 = ssub.s32 %s21, %s28
      %s63 = sor.u32 %s61, %s62
      %p64 = scmp.eq.s32.totalorder %s63, 0
      %s66 = sadd.s32 %s65, 1
      %s67 = scalar_select %p64, %s65, %s66
      %p70 = pneg %p64
      %p71 = scmp.eq.s32.totalorder %s13, 3
      %p72 = por %p70, %p71
      %p73 = scmp.ne.s32.totalorder %s65, %s68
      %p74 = scmp.eq.s32.totalorder %s13, 0
      %p75 = por %p73, %p74
      %p76 = scmp.ne.s32.totalorder %s65, %s68
      %p77 = scmp.eq.s32.totalorder %s18, 3
      %p78 = por %p76, %p77
      %p79 = scmp.ne.s32.totalorder %s68, %s69
      %p80 = scmp.eq.s32.totalorder %s18, 0
      %p81 = por %p79, %p80
      %p82 = scmp.ne.s32.totalorder %s68, %s69
      %p83 = scmp.eq.s32.totalorder %s19, 3
      %p84 = por %p82, %p83
      %p86 = scmp.ne.s32.totalorder %s69, %s85
      %p87 = scmp.eq.s32.totalorder %s19, 0
      %p88 = por %p86, %p87
      %s90 = sadd.s32 %s89, 1
      %p93 = scmp.eq.s32.totalorder %s13, 3
      %p94 = scmp.ne.s32.totalorder %s89, %s91
      %p95 = scmp.eq.s32.totalorder %s13, 0
      %p96 = por %p94, %p95
      %p97 = scmp.ne.s32.totalorder %s89, %s91
      %p98 = scmp.eq.s32.totalorder %s18, 3
      %p99 = por %p97, %p98
      %p100 = scmp.ne.s32.totalorder %s91, %s92
      %p101 = scmp.eq.s32.totalorder %s18, 0
      %p102 = por %p100, %p101
      %p103 = scmp.ne.s32.totalorder %s91, %s92
      %p104 = scmp.eq.s32.totalorder %s19, 3
      %p105 = por %p103, %p104
      %p107 = scmp.ne.s32.totalorder %s92, %s106
      %p108 = scmp.eq.s32.totalorder %s19, 0
      %p109 = por %p107, %p108
      %s111 = sadd.s32 %s110, 1
      %p114 = scmp.eq.s32.totalorder %s13, 3
      %p115 = scmp.ne.s32.totalorder %s110, %s112
      %p116 = scmp.eq.s32.totalorder %s13, 0
      %p117 = por %p115, %p116
      %p118 = scmp.ne.s32.totalorder %s110, %s112
      %p119 = scmp.eq.s32.totalorder %s18, 3
      %p120 = por %p118, %p119
      %p121 = scmp.ne.s32.totalorder %s112, %s113
      %p122 = scmp.eq.s32.totalorder %s18, 0
      %p123 = por %p121, %p122
      %p124 = scmp.ne.s32.totalorder %s112, %s113
      %p125 = scmp.eq.s32.totalorder %s19, 3
      %p126 = por %p124, %p125
      %p128 = scmp.ne.s32.totalorder %s113, %s127
      %p129 = scmp.eq.s32.totalorder %s19, 0
      %p130 = por %p128, %p129
      %s131 = ssub.s32 %s20, %s32
      %s132 = ssub.s32 %s21, %s28
      %s133 = sor.u32 %s131, %s132
      %p134 = scmp.eq.s32.totalorder %s133, 0
      %s136 = sadd.s32 %s135, 1
      %s137 = scalar_select %p134, %s135, %s136
      %p140 = pneg %p134
      %p141 = scmp.eq.s32.totalorder %s13, 3
      %p142 = por %p140, %p141
      %p143 = scmp.ne.s32.totalorder %s135, %s138
      %p144 = scmp.eq.s32.totalorder %s13, 0
      %p145 = por %p143, %p144
      %p146 = scmp.ne.s32.totalorder %s135, %s138
      %p147 = scmp.eq.s32.totalorder %s18, 3
      %p148 = por %p146, %p147
      %p149 = scmp.ne.s32.totalorder %s138, %s139
      %p150 = scmp.eq.s32.totalorder %s18, 0
      %p151 = por %p149, %p150
      %p152 = scmp.ne.s32.totalorder %s138, %s139
      %p153 = scmp.eq.s32.totalorder %s19, 3
      %p154 = por %p152, %p153
      %p156 = scmp.ne.s32.totalorder %s139, %s155
      %p157 = scmp.eq.s32.totalorder %s19, 0
      %p158 = por %p156, %p157
      %p159 = scmp.le.s32.totalorder 1, %s13
      %p160 = scmp.lt.s32.totalorder %s13, 5
      %p161 = pnand %p159, %p160
      %p162 = pneg %p161
      // Predicated region
      $region9: #{tpu_custom_call.1} parent=5 // pred_check
        _
      $region10: #{tpu_custom_call.1} parent=5 // pred_check_branch
        %164 = sbr.rel (%p161) target = $region12
      $region11: #{tpu_custom_call.1} parent=5 // pred_region
        %s165 = ssub.s32 %s13, 1
        // Predicated region
        $region13: #{tpu_custom_call.1} parent=11 // pred_check
          %p166 = pneg %p102
        $region14: #{tpu_custom_call.1} parent=11 // pred_check_branch
          %168 = sbr.rel (%p166) target = $region16
        $region15: #{tpu_custom_call.1} parent=11 // pred_region
          _
        $region16: #{tpu_custom_call.1} parent=11 // pred_fallthru
          _
        // Predicated region
        $region17: #{tpu_custom_call.1} parent=11 // pred_check
          %p169 = pneg %p123
        $region18: #{tpu_custom_call.1} parent=11 // pred_check_branch
          %171 = sbr.rel (%p169) target = $region20
        $region19: #{tpu_custom_call.1} parent=11 // pred_region
          _
        $region20: #{tpu_custom_call.1} parent=11 // pred_fallthru
          _
      $region12: #{tpu_custom_call.1} parent=5 // pred_fallthru
        _
      %p172 = scmp.lt.s32.totalorder %s13, 4
      // Predicated region
      $region21: #{tpu_custom_call.1} parent=5 // pred_check
        %p173 = pneg %p172
      $region22: #{tpu_custom_call.1} parent=5 // pred_check_branch
        %175 = sbr.rel (%p173) target = $region24
      $region23: #{tpu_custom_call.1} parent=5 // pred_region
        // Predicated region
        $region25: #{tpu_custom_call.1} parent=23 // pred_check
          %p176 = pneg %p47
        $region26: #{tpu_custom_call.1} parent=23 // pred_check_branch
          %178 = sbr.rel (%p176) target = $region28
        $region27: #{tpu_custom_call.1} parent=23 // pred_region
          %p179 = scmp.lt.s32.totalorder %s20, 1
          %s180 = scalar_select %p179, %s20, 1
          %p181 = scmp.lt.s32.totalorder %s21, 1
          %s182 = scalar_select %p181, %s21, 1
          %s183 = smul.addr %s180, 2
          %s184 = sadd.s32 %s182, %s183
          %s185 = smul.addr %s184, 4
          %s186 = scalar_lea.vmem %s0, %s185
        $region28: #{tpu_custom_call.1} parent=23 // pred_fallthru
          _
        // Predicated region
        $region29: #{tpu_custom_call.1} parent=23 // pred_check
          %p187 = pneg %p75
        $region30: #{tpu_custom_call.1} parent=23 // pred_check_branch
          %189 = sbr.rel (%p187) target = $region32
        $region31: #{tpu_custom_call.1} parent=23 // pred_region
          %p190 = scmp.lt.s32.totalorder %s20, 1
          %s191 = scalar_select %p190, %s20, 1
          %p192 = scmp.lt.s32.totalorder %s21, 1
          %s193 = scalar_select %p192, %s21, 1
          %s194 = smul.addr %s191, 2
          %s195 = sadd.s32 %s193, %s194
          %s196 = smul.addr %s195, 4
          %s197 = scalar_lea.vmem %s1, %s196
        $region32: #{tpu_custom_call.1} parent=23 // pred_fallthru
          _
      $region24: #{tpu_custom_call.1} parent=5 // pred_fallthru
        _
      %p198 = scmp.le.s32.totalorder 1, %s13
      %p199 = scmp.lt.s32.totalorder %s13, 5
      %p200 = pnand %p198, %p199
      %p201 = pneg %p200
      // Predicated region
      $region33: #{tpu_custom_call.1} parent=5 // pred_check
        _
      $region34: #{tpu_custom_call.1} parent=5 // pred_check_branch
        %203 = sbr.rel (%p200) target = $region36
      $region35: #{tpu_custom_call.1} parent=5 // pred_region
        %s204 = ssub.s32 %s13, 1
        %p205 = scmp.lt.s32.totalorder %s22, 1
        %s206 = scalar_select %p205, %s22, 1
        %p207 = scmp.lt.s32.totalorder %s23, 1
        %s208 = scalar_select %p207, %s23, 1
        %s209 = smul.addr %s206, 2
        %s210 = sadd.s32 %s208, %s209
        %s211 = smul.addr %s210, 4
        %s212 = scalar_lea.vmem %s0, %s211
        %p213 = pneg %p53
        %p214 = pneg %p50
        %p215 = scmp.lt.s32.totalorder %s22, 1
        %s216 = scalar_select %p215, %s22, 1
        %p217 = scmp.lt.s32.totalorder %s23, 1
        %s218 = scalar_select %p217, %s23, 1
        %s219 = smul.addr %s216, 2
        %s220 = sadd.s32 %s218, %s219
        %s221 = smul.addr %s220, 4
        %s222 = scalar_lea.vmem %s1, %s221
        %p223 = pneg %p81
        %p224 = pneg %p78
        %p225 = pneg %p102
        %p226 = pneg %p99
        %p227 = pneg %p123
        %p228 = pneg %p120
        %p229 = pneg %p151
        %p230 = pneg %p148
        %s231 = sand.u32 %s138, 1
        %s232 = scalar_lea.sflag [#allocation3], %s231
        %s233 = sand.u32 %s138, 1
        %s234 = smul.addr %s233, 16
        %s235 = scalar_lea.vmem [#allocation2], %s234
        %p236 = scmp.lt.s32.totalorder %s22, 1
        %s237 = scalar_select %p236, %s22, 1
        %p238 = scmp.lt.s32.totalorder %s23, 1
        %s239 = scalar_select %p238, %s23, 1
        %s240 = smul.addr %s237, 2
        %s241 = sadd.s32 %s239, %s240
        %s242 = smul.addr %s241, 4
        %s243 = scalar_lea.vmem %s0, %s242
        %p244 = scmp.lt.s32.totalorder %s22, 1
        %s245 = scalar_select %p244, %s22, 1
        %p246 = scmp.lt.s32.totalorder %s23, 1
        %s247 = scalar_select %p246, %s23, 1
        %s248 = smul.addr %s245, 2
        %s249 = sadd.s32 %s247, %s248
        %s250 = smul.addr %s249, 4
        %s251 = scalar_lea.vmem %s1, %s250
        %s252 = smul.u32 2, %s23
        %v254 = vld [vmem:[%s243] sm:$0xf]
        %v255 = vpack.c.bf16 %v254, %v254
        %v256 = vld [vmem:[%s251] sm:$0xf]
        %v257 = vpack.c.bf16 %v256, %v256
        %v258 = vlaneseq
        %v259 = vand.u32 %v258, 127
        %vm260 = vcmp.lt.s32.totalorder %v259, 0
        %v261 = vsub.s32 0, %v259
        %v262 = vsel %vm260, %v261, %v259
        %v263 = vshrl.u32 %v262, 4
        %v264 = vand.u32 %v262, 15
        %v265 = vsub.s32 0, %v264
        %v266 = vsel %vm260, %v265, %v264
        %vm267 = vcmp.ne.s32.totalorder %v266, 0
        %vm268 = vcmp.lt.s32.totalorder %v266, 0
        %vm269 = vmand %vm268, %vm267
        %v270 = vadd.s32 %v266, 16
        %v271 = vsel %vm269, %v270, %v266
        %vm272 = vcmp.lt.s32.totalorder %v271, 15
        %274 = vrot.lane.b32.xlu0 %v255, 127
        %v275 = vpop.permute.xlu0 %274
        %v278 = vsel %vm272, 1, 0
        %vm279 = vcmp.eq.s32.totalorder %v278, 1
        %vm280 = vmpackc.low %vm279, %vm279
        %v281 = vsel %vm280, %v275, 0
        %282 = vrot.lane.b32.xlu0 %v255, 112
        %v283 = vpop.permute.xlu0 %282
        %285 = vrot.lane.b32.xlu0 %v257, 112
        %v286 = vpop.permute.xlu0 %285
        %vm287 = vcmask 916480
        %v290 = vsel %vm287, %v283, %v286
        %292 = vrot.lane.b32.xlu0 %v290, 127
        %v293 = vpop.permute.xlu0 %292
        %v296 = vsel %vm280, %v293, 0
        %s297 = scalar_lea.vmem %s2, 16
        %v298 = vld [vmem:[%s297] sm:$0xf]
        %s299 = scalar_lea.vmem %s2, 20
        %v300 = vld [vmem:[%s299] sm:$0xf]
        %s301 = scalar_lea.vmem %s2, 12
        %v302 = vld [vmem:[%s301] sm:$0xf]
        %vm303 = vcmask 31744
        %v305 = vsel %vm303, %v302, 0
        %vm307 = vcmask 1041408
        %v309 = vsel %vm307, %v281, 0
        %311 = vmatprep.subr.bf16.mxu0 0
        %312 = vmatpush1.bf16.msra.mxu0 %v309
        %313 = vmatprep.subr.bf16.mxu0 0
        %314 = vmatpush1.bf16.msra.mxu0 0
        %315 = vmatprep.subr.bf16.mxu0 0
        %316 = vmatpush1.bf16.msra.mxu0 0
        %317 = vmatprep.subr.bf16.mxu0 0
        %318 = vmatpush1.bf16.msra.mxu0 0
        %319 = vmatprep.subr.bf16.mxu0 0
        %320 = vmatpush1.bf16.msra.mxu0 0
        %321 = vmatprep.subr.bf16.mxu0 0
        %322 = vmatpush1.bf16.msra.mxu0 0
        %323 = vmatprep.subr.bf16.mxu0 0
        %324 = vmatpush1.bf16.msra.mxu0 0
        %325 = vmatprep.subr.bf16.mxu0 0
        %326 = vmatpush1.bf16.msra.mxu0 0
        %327 = vmatprep.subr.bf16.mxu0 0
        %328 = vmatpush1.bf16.msra.mxu0 0
        %329 = vmatprep.subr.bf16.mxu0 0
        %330 = vmatpush1.bf16.msra.mxu0 0
        %331 = vmatprep.subr.bf16.mxu0 0
        %332 = vmatpush1.bf16.msra.mxu0 0
        %333 = vmatprep.subr.bf16.mxu0 0
        %334 = vmatpush1.bf16.msra.mxu0 0
        %335 = vmatprep.subr.bf16.mxu0 0
        %336 = vmatpush1.bf16.msra.mxu0 0
        %337 = vmatprep.subr.bf16.mxu0 0
        %338 = vmatpush1.bf16.msra.mxu0 0
        %339 = vmatprep.subr.bf16.mxu0 0
        %340 = vmatpush1.bf16.msra.mxu0 0
        %341 = vmatprep.subr.bf16.mxu0 0
        %342 = vmatpush1.bf16.msra.mxu0 0
        %343 = vmatprep.mubr.bf16.mxu0 0
        %344 = vmatmul.mubr.bf16.gmra.mrb[0].mxu0 %v305
        %v345 = vpop.f32.mrb[0].mxu0
        %v346 = vadd.f32 0.0, %v345
        %v347 = vpop.f32.mrb[0].mxu0
        %v348 = vpop.f32.mrb[0].mxu0
        %v349 = vpop.f32.mrb[0].mxu0
        %350 = vdwg.mxu0
        %v352 = vsel %vm303, %v300, 0
        %v355 = vsel %vm307, %v255, 0
        %357 = vmatprep.subr.bf16.mxu0 0
        %358 = vmatpush1.bf16.msra.mxu0 %v355
        %359 = vmatprep.subr.bf16.mxu0 0
        %360 = vmatpush1.bf16.msra.mxu0 0
        %361 = vmatprep.subr.bf16.mxu0 0
        %362 = vmatpush1.bf16.msra.mxu0 0
        %363 = vmatprep.subr.bf16.mxu0 0
        %364 = vmatpush1.bf16.msra.mxu0 0
        %365 = vmatprep.subr.bf16.mxu0 0
        %366 = vmatpush1.bf16.msra.mxu0 0
        %367 = vmatprep.subr.bf16.mxu0 0
        %368 = vmatpush1.bf16.msra.mxu0 0
        %369 = vmatprep.subr.bf16.mxu0 0
        %370 = vmatpush1.bf16.msra.mxu0 0
        %371 = vmatprep.subr.bf16.mxu0 0
        %372 = vmatpush1.bf16.msra.mxu0 0
        %373 = vmatprep.subr.bf16.mxu0 0
        %374 = vmatpush1.bf16.msra.mxu0 0
        %375 = vmatprep.subr.bf16.mxu0 0
        %376 = vmatpush1.bf16.msra.mxu0 0
        %377 = vmatprep.subr.bf16.mxu0 0
        %378 = vmatpush1.bf16.msra.mxu0 0
        %379 = vmatprep.subr.bf16.mxu0 0
        %380 = vmatpush1.bf16.msra.mxu0 0
        %381 = vmatprep.subr.bf16.mxu0 0
        %382 = vmatpush1.bf16.msra.mxu0 0
        %383 = vmatprep.subr.bf16.mxu0 0
        %384 = vmatpush1.bf16.msra.mxu0 0
        %385 = vmatprep.subr.bf16.mxu0 0
        %386 = vmatpush1.bf16.msra.mxu0 0
        %387 = vmatprep.subr.bf16.mxu0 0
        %388 = vmatpush1.bf16.msra.mxu0 0
        %389 = vmatprep.mubr.bf16.mxu0 0
        %390 = vmatmul.mubr.bf16.gmra.mrb[0].mxu0 %v352
        %v391 = vpop.f32.mrb[0].mxu0
        %v392 = vadd.f32 %v346, %v391
        %v393 = vpop.f32.mrb[0].mxu0
        %v394 = vpop.f32.mrb[0].mxu0
        %v395 = vpop.f32.mrb[0].mxu0
        %396 = vdwg.mxu0
        %s397 = scalar_lea.vmem %s2, 28
        %v398 = vld [vmem:[%s397] sm:$0xf]
        %s399 = scalar_lea.vmem %s2, 4
        %v400 = vld [vmem:[%s399] sm:$0xf]
        %v402 = vsel %vm303, %v400, 0
        %v404 = vsel %vm307, %v290, 0
        %406 = vmatprep.subr.bf16.mxu0 0
        %407 = vmatpush1.bf16.msra.mxu0 %v404
        %408 = vmatprep.subr.bf16.mxu0 0
        %409 = vmatpush1.bf16.msra.mxu0 0
        %410 = vmatprep.subr.bf16.mxu0 0
        %411 = vmatpush1.bf16.msra.mxu0 0
        %412 = vmatprep.subr.bf16.mxu0 0
        %413 = vmatpush1.bf16.msra.mxu0 0
        %414 = vmatprep.subr.bf16.mxu0 0
        %415 = vmatpush1.bf16.msra.mxu0 0
        %416 = vmatprep.subr.bf16.mxu0 0
        %417 = vmatpush1.bf16.msra.mxu0 0
        %418 = vmatprep.subr.bf16.mxu0 0
        %419 = vmatpush1.bf16.msra.mxu0 0
        %420 = vmatprep.subr.bf16.mxu0 0
        %421 = vmatpush1.bf16.msra.mxu0 0
        %422 = vmatprep.subr.bf16.mxu0 0
        %423 = vmatpush1.bf16.msra.mxu0 0
        %424 = vmatprep.subr.bf16.mxu0 0
        %425 = vmatpush1.bf16.msra.mxu0 0
        %426 = vmatprep.subr.bf16.mxu0 0
        %427 = vmatpush1.bf16.msra.mxu0 0
        %428 = vmatprep.subr.bf16.mxu0 0
        %429 = vmatpush1.bf16.msra.mxu0 0
        %430 = vmatprep.subr.bf16.mxu0 0
        %431 = vmatpush1.bf16.msra.mxu0 0
        %432 = vmatprep.subr.bf16.mxu0 0
        %433 = vmatpush1.bf16.msra.mxu0 0
        %434 = vmatprep.subr.bf16.mxu0 0
        %435 = vmatpush1.bf16.msra.mxu0 0
        %436 = vmatprep.subr.bf16.mxu0 0
        %437 = vmatpush1.bf16.msra.mxu0 0
        %438 = vmatprep.mubr.bf16.mxu0 0
        %439 = vmatmul.mubr.bf16.gmra.mrb[0].mxu0 %v402
        %v440 = vpop.f32.mrb[0].mxu0
        %v441 = vadd.f32 0.0, %v440
        %v442 = vpop.f32.mrb[0].mxu0
        %v443 = vpop.f32.mrb[0].mxu0
        %v444 = vpop.f32.mrb[0].mxu0
        %445 = vdwg.mxu0
        %v447 = vsel %vm303, %v398, 0
        %449 = vmatprep.subr.bf16.mxu0 0
        %450 = vmatpush1.bf16.msra.mxu0 %v355
        %451 = vmatprep.subr.bf16.mxu0 0
        %452 = vmatpush1.bf16.msra.mxu0 0
        %453 = vmatprep.subr.bf16.mxu0 0
        %454 = vmatpush1.bf16.msra.mxu0 0
        %455 = vmatprep.subr.bf16.mxu0 0
        %456 = vmatpush1.bf16.msra.mxu0 0
        %457 = vmatprep.subr.bf16.mxu0 0
        %458 = vmatpush1.bf16.msra.mxu0 0
        %459 = vmatprep.subr.bf16.mxu0 0
        %460 = vmatpush1.bf16.msra.mxu0 0
        %461 = vmatprep.subr.bf16.mxu0 0
        %462 = vmatpush1.bf16.msra.mxu0 0
        %463 = vmatprep.subr.bf16.mxu0 0
        %464 = vmatpush1.bf16.msra.mxu0 0
        %465 = vmatprep.subr.bf16.mxu0 0
        %466 = vmatpush1.bf16.msra.mxu0 0
        %467 = vmatprep.subr.bf16.mxu0 0
        %468 = vmatpush1.bf16.msra.mxu0 0
        %469 = vmatprep.subr.bf16.mxu0 0
        %470 = vmatpush1.bf16.msra.mxu0 0
        %471 = vmatprep.subr.bf16.mxu0 0
        %472 = vmatpush1.bf16.msra.mxu0 0
        %473 = vmatprep.subr.bf16.mxu0 0
        %474 = vmatpush1.bf16.msra.mxu0 0
        %475 = vmatprep.subr.bf16.mxu0 0
        %476 = vmatpush1.bf16.msra.mxu0 0
        %477 = vmatprep.subr.bf16.mxu0 0
        %478 = vmatpush1.bf16.msra.mxu0 0
        %479 = vmatprep.subr.bf16.mxu0 0
        %480 = vmatpush1.bf16.msra.mxu0 0
        %481 = vmatprep.mubr.bf16.mxu0 0
        %482 = vmatmul.mubr.bf16.gmra.mrb[0].mxu0 %v447
        %v483 = vpop.f32.mrb[0].mxu0
        %v484 = vadd.f32 %v441, %v483
        %v485 = vpop.f32.mrb[0].mxu0
        %v486 = vpop.f32.mrb[0].mxu0
        %v487 = vpop.f32.mrb[0].mxu0
        %488 = vdwg.mxu0
        %s489 = scalar_lea.vmem %s2, 32
        %v490 = vld [vmem:[%s489] sm:$0xf]
        %s491 = scalar_lea.vmem %s2, 24
        %v492 = vld [vmem:[%s491] sm:$0xf]
        %v494 = vsel %vm303, %v492, 0
        %496 = vmatprep.subr.bf16.mxu0 0
        %497 = vmatpush1.bf16.msra.mxu0 %v309
        %498 = vmatprep.subr.bf16.mxu0 0
        %499 = vmatpush1.bf16.msra.mxu0 0
        %500 = vmatprep.subr.bf16.mxu0 0
        %501 = vmatpush1.bf16.msra.mxu0 0
        %502 = vmatprep.subr.bf16.mxu0 0
        %503 = vmatpush1.bf16.msra.mxu0 0
        %504 = vmatprep.subr.bf16.mxu0 0
        %505 = vmatpush1.bf16.msra.mxu0 0
        %506 = vmatprep.subr.bf16.mxu0 0
        %507 = vmatpush1.bf16.msra.mxu0 0
        %508 = vmatprep.subr.bf16.mxu0 0
        %509 = vmatpush1.bf16.msra.mxu0 0
        %510 = vmatprep.subr.bf16.mxu0 0
        %511 = vmatpush1.bf16.msra.mxu0 0
        %512 = vmatprep.subr.bf16.mxu0 0
        %513 = vmatpush1.bf16.msra.mxu0 0
        %514 = vmatprep.subr.bf16.mxu0 0
        %515 = vmatpush1.bf16.msra.mxu0 0
        %516 = vmatprep.subr.bf16.mxu0 0
        %517 = vmatpush1.bf16.msra.mxu0 0
        %518 = vmatprep.subr.bf16.mxu0 0
        %519 = vmatpush1.bf16.msra.mxu0 0
        %520 = vmatprep.subr.bf16.mxu0 0
        %521 = vmatpush1.bf16.msra.mxu0 0
        %522 = vmatprep.subr.bf16.mxu0 0
        %523 = vmatpush1.bf16.msra.mxu0 0
        %524 = vmatprep.subr.bf16.mxu0 0
        %525 = vmatpush1.bf16.msra.mxu0 0
        %526 = vmatprep.subr.bf16.mxu0 0
        %527 = vmatpush1.bf16.msra.mxu0 0
        %528 = vmatprep.mubr.bf16.mxu0 0
        %529 = vmatmul.mubr.bf16.gmra.mrb[0].mxu0 %v494
        %v530 = vpop.f32.mrb[0].mxu0
        %v531 = vadd.f32 0.0, %v530
        %v532 = vpop.f32.mrb[0].mxu0
        %v533 = vpop.f32.mrb[0].mxu0
        %v534 = vpop.f32.mrb[0].mxu0
        %535 = vdwg.mxu0
        %v537 = vsel %vm303, %v490, 0
        %539 = vmatprep.subr.bf16.mxu0 0
        %540 = vmatpush1.bf16.msra.mxu0 %v355
        %541 = vmatprep.subr.bf16.mxu0 0
        %542 = vmatpush1.bf16.msra.mxu0 0
        %543 = vmatprep.subr.bf16.mxu0 0
        %544 = vmatpush1.bf16.msra.mxu0 0
        %545 = vmatprep.subr.bf16.mxu0 0
        %546 = vmatpush1.bf16.msra.mxu0 0
        %547 = vmatprep.subr.bf16.mxu0 0
        %548 = vmatpush1.bf16.msra.mxu0 0
        %549 = vmatprep.subr.bf16.mxu0 0
        %550 = vmatpush1.bf16.msra.mxu0 0
        %551 = vmatprep.subr.bf16.mxu0 0
        %552 = vmatpush1.bf16.msra.mxu0 0
        %553 = vmatprep.subr.bf16.mxu0 0
        %554 = vmatpush1.bf16.msra.mxu0 0
        %555 = vmatprep.subr.bf16.mxu0 0
        %556 = vmatpush1.bf16.msra.mxu0 0
        %557 = vmatprep.subr.bf16.mxu0 0
        %558 = vmatpush1.bf16.msra.mxu0 0
        %559 = vmatprep.subr.bf16.mxu0 0
        %560 = vmatpush1.bf16.msra.mxu0 0
        %561 = vmatprep.subr.bf16.mxu0 0
        %562 = vmatpush1.bf16.msra.mxu0 0
        %563 = vmatprep.subr.bf16.mxu0 0
        %564 = vmatpush1.bf16.msra.mxu0 0
        %565 = vmatprep.subr.bf16.mxu0 0
        %566 = vmatpush1.bf16.msra.mxu0 0
        %567 = vmatprep.subr.bf16.mxu0 0
        %568 = vmatpush1.bf16.msra.mxu0 0
        %569 = vmatprep.subr.bf16.mxu0 0
        %570 = vmatpush1.bf16.msra.mxu0 0
        %571 = vmatprep.mubr.bf16.mxu0 0
        %572 = vmatmul.mubr.bf16.gmra.mrb[0].mxu0 %v537
        %v573 = vpop.f32.mrb[0].mxu0
        %v574 = vadd.f32 %v531, %v573
        %v575 = vpop.f32.mrb[0].mxu0
        %v576 = vpop.f32.mrb[0].mxu0
        %v577 = vpop.f32.mrb[0].mxu0
        %578 = vdwg.mxu0
        %s579 = scalar_lea.vmem %s2, 8
        %v580 = vld [vmem:[%s579] sm:$0xf]
        %v582 = vsel %vm303, %v580, 0
        %584 = vmatprep.subr.bf16.mxu0 0
        %585 = vmatpush1.bf16.msra.mxu0 %v404
        %586 = vmatprep.subr.bf16.mxu0 0
        %587 = vmatpush1.bf16.msra.mxu0 0
        %588 = vmatprep.subr.bf16.mxu0 0
        %589 = vmatpush1.bf16.msra.mxu0 0
        %590 = vmatprep.subr.bf16.mxu0 0
        %591 = vmatpush1.bf16.msra.mxu0 0
        %592 = vmatprep.subr.bf16.mxu0 0
        %593 = vmatpush1.bf16.msra.mxu0 0
        %594 = vmatprep.subr.bf16.mxu0 0
        %595 = vmatpush1.bf16.msra.mxu0 0
        %596 = vmatprep.subr.bf16.mxu0 0
        %597 = vmatpush1.bf16.msra.mxu0 0
        %598 = vmatprep.subr.bf16.mxu0 0
        %599 = vmatpush1.bf16.msra.mxu0 0
        %600 = vmatprep.subr.bf16.mxu0 0
        %601 = vmatpush1.bf16.msra.mxu0 0
        %602 = vmatprep.subr.bf16.mxu0 0
        %603 = vmatpush1.bf16.msra.mxu0 0
        %604 = vmatprep.subr.bf16.mxu0 0
        %605 = vmatpush1.bf16.msra.mxu0 0
        %606 = vmatprep.subr.bf16.mxu0 0
        %607 = vmatpush1.bf16.msra.mxu0 0
        %608 = vmatprep.subr.bf16.mxu0 0
        %609 = vmatpush1.bf16.msra.mxu0 0
        %610 = vmatprep.subr.bf16.mxu0 0
        %611 = vmatpush1.bf16.msra.mxu0 0
        %612 = vmatprep.subr.bf16.mxu0 0
        %613 = vmatpush1.bf16.msra.mxu0 0
        %614 = vmatprep.subr.bf16.mxu0 0
        %615 = vmatpush1.bf16.msra.mxu0 0
        %616 = vmatprep.mubr.bf16.mxu0 0
        %617 = vmatmul.mubr.bf16.gmra.mrb[0].mxu0 %v582
        %v618 = vpop.f32.mrb[0].mxu0
        %v619 = vadd.f32 0.0, %v618
        %v620 = vpop.f32.mrb[0].mxu0
        %v621 = vpop.f32.mrb[0].mxu0
        %v622 = vpop.f32.mrb[0].mxu0
        %623 = vdwg.mxu0
        %v624 = vadd.f32 %v574, %v619
        %v625 = vld [vmem:[%s2] sm:$0xf]
        %v627 = vsel %vm303, %v625, 0
        %v630 = vsel %vm307, %v296, 0
        %632 = vmatprep.subr.bf16.mxu0 0
        %633 = vmatpush1.bf16.msra.mxu0 %v630
        %634 = vmatprep.subr.bf16.mxu0 0
        %635 = vmatpush1.bf16.msra.mxu0 0
        %636 = vmatprep.subr.bf16.mxu0 0
        %637 = vmatpush1.bf16.msra.mxu0 0
        %638 = vmatprep.subr.bf16.mxu0 0
        %639 = vmatpush1.bf16.msra.mxu0 0
        %640 = vmatprep.subr.bf16.mxu0 0
        %641 = vmatpush1.bf16.msra.mxu0 0
        %642 = vmatprep.subr.bf16.mxu0 0
        %643 = vmatpush1.bf16.msra.mxu0 0
        %644 = vmatprep.subr.bf16.mxu0 0
        %645 = vmatpush1.bf16.msra.mxu0 0
        %646 = vmatprep.subr.bf16.mxu0 0
        %647 = vmatpush1.bf16.msra.mxu0 0
        %648 = vmatprep.subr.bf16.mxu0 0
        %649 = vmatpush1.bf16.msra.mxu0 0
        %650 = vmatprep.subr.bf16.mxu0 0
        %651 = vmatpush1.bf16.msra.mxu0 0
        %652 = vmatprep.subr.bf16.mxu0 0
        %653 = vmatpush1.bf16.msra.mxu0 0
        %654 = vmatprep.subr.bf16.mxu0 0
        %655 = vmatpush1.bf16.msra.mxu0 0
        %656 = vmatprep.subr.bf16.mxu0 0
        %657 = vmatpush1.bf16.msra.mxu0 0
        %658 = vmatprep.subr.bf16.mxu0 0
        %659 = vmatpush1.bf16.msra.mxu0 0
        %660 = vmatprep.subr.bf16.mxu0 0
        %661 = vmatpush1.bf16.msra.mxu0 0
        %662 = vmatprep.subr.bf16.mxu0 0
        %663 = vmatpush1.bf16.msra.mxu0 0
        %664 = vmatprep.mubr.bf16.mxu0 0
        %665 = vmatmul.mubr.bf16.gmra.mrb[0].mxu0 %v627
        %v666 = vpop.f32.mrb[0].mxu0
        %v667 = vadd.f32 0.0, %v666
        %v668 = vpop.f32.mrb[0].mxu0
        %v669 = vpop.f32.mrb[0].mxu0
        %v670 = vpop.f32.mrb[0].mxu0
        %671 = vdwg.mxu0
        %v672 = vadd.f32 %v624, %v667
        %v673 = vld [vmem:[%s3] sm:$0xff]
        %675 = vset.pattern.permute.xlu0 0
        %676 = vperm.xlu0 %675, %v673
        %v677 = vpop.permute.xlu0 %676
        %v680 = vsel %vm303, %v298, 0
        %682 = vmatprep.subr.bf16.mxu0 0
        %683 = vmatpush1.bf16.msra.mxu0 %v355
        %684 = vmatprep.subr.bf16.mxu0 0
        %685 = vmatpush1.bf16.msra.mxu0 0
        %686 = vmatprep.subr.bf16.mxu0 0
        %687 = vmatpush1.bf16.msra.mxu0 0
        %688 = vmatprep.subr.bf16.mxu0 0
        %689 = vmatpush1.bf16.msra.mxu0 0
        %690 = vmatprep.subr.bf16.mxu0 0
        %691 = vmatpush1.bf16.msra.mxu0 0
        %692 = vmatprep.subr.bf16.mxu0 0
        %693 = vmatpush1.bf16.msra.mxu0 0
        %694 = vmatprep.subr.bf16.mxu0 0
        %695 = vmatpush1.bf16.msra.mxu0 0
        %696 = vmatprep.subr.bf16.mxu0 0
        %697 = vmatpush1.bf16.msra.mxu0 0
        %698 = vmatprep.subr.bf16.mxu0 0
        %699 = vmatpush1.bf16.msra.mxu0 0
        %700 = vmatprep.subr.bf16.mxu0 0
        %701 = vmatpush1.bf16.msra.mxu0 0
        %702 = vmatprep.subr.bf16.mxu0 0
        %703 = vmatpush1.bf16.msra.mxu0 0
        %704 = vmatprep.subr.bf16.mxu0 0
        %705 = vmatpush1.bf16.msra.mxu0 0
        %706 = vmatprep.subr.bf16.mxu0 0
        %707 = vmatpush1.bf16.msra.mxu0 0
        %708 = vmatprep.subr.bf16.mxu0 0
        %709 = vmatpush1.bf16.msra.mxu0 0
        %710 = vmatprep.subr.bf16.mxu0 0
        %711 = vmatpush1.bf16.msra.mxu0 0
        %712 = vmatprep.subr.bf16.mxu0 0
        %713 = vmatpush1.bf16.msra.mxu0 0
        %714 = vmatprep.mubr.bf16.mxu0 0
        %715 = vmatmul.mubr.bf16.gmra.mrb[0].mxu0 %v680
        %v716 = vpop.f32.mrb[0].mxu0
        %v717 = vadd.f32 %v677, %v716
        %v718 = vpop.f32.mrb[0].mxu0
        %v719 = vpop.f32.mrb[0].mxu0
        %v720 = vpop.f32.mrb[0].mxu0
        %721 = vdwg.mxu0
        %v722 = vmax.f32 %v717, 0.0
        %v724 = vadd.s32 %v722, 32767
        %v725 = vshrl.u32 %v722, 16
        %v726 = vand.u32 %v725, 1
        %v727 = vadd.s32 %v724, %v726
        %v728 = vshrl.u32 %v727, 16
        %v729 = vadd.f32 %v392, %v677
        %v730 = vmax.f32 %v729, 0.0
        %v732 = vadd.s32 %v730, 32767
        %v733 = vshrl.u32 %v730, 16
        %v734 = vand.u32 %v733, 1
        %v735 = vadd.s32 %v732, %v734
        %v736 = vshrl.u32 %v735, 16
        %v737 = vadd.f32 %v484, %v677
        %v738 = vmax.f32 %v737, 0.0
        %v740 = vadd.s32 %v738, 32767
        %v741 = vshrl.u32 %v738, 16
        %v742 = vand.u32 %v741, 1
        %v743 = vadd.s32 %v740, %v742
        %v744 = vshrl.u32 %v743, 16
        %v745 = vadd.f32 %v672, %v677
        %v746 = vmax.f32 %v745, 0.0
        %v748 = vadd.s32 %v746, 32767
        %v749 = vshrl.u32 %v746, 16
        %v750 = vand.u32 %v749, 1
        %v751 = vadd.s32 %v748, %v750
        %v752 = vshrl.u32 %v751, 16
        %v753 = vshll.u32 %v736, 16
        %v754 = vor.u32 %v728, %v753
        %v755 = vshll.u32 %v752, 16
        %v756 = vor.u32 %v744, %v755
        %vm757 = vcmask 130048
        %758 = vst.msk [vmem:[%s235] sm:$0xff] %vm757, %v754
        %759 = vrot.lane.b32.xlu0 %v756, 16
        %v760 = vpop.permute.xlu0 %759
        %vm761 = vcmask 261248
        %762 = vst.msk [vmem:[%s235] sm:$0xff] %vm761, %v760
        %763 = vrot.lane.b32.xlu0 %v754, 16
        %v764 = vpop.permute.xlu0 %763
        %vm765 = vcmask 392448
        %766 = vst.msk [vmem:[%s235] sm:$0xff] %vm765, %v764
        %767 = vrot.lane.b32.xlu0 %v756, 32
        %v768 = vpop.permute.xlu0 %767
        %vm769 = vcmask 523648
        %770 = vst.msk [vmem:[%s235] sm:$0xff] %vm769, %v768
        %771 = vrot.lane.b32.xlu0 %v754, 32
        %v772 = vpop.permute.xlu0 %771
        %vm773 = vcmask 654848
        %774 = vst.msk [vmem:[%s235] sm:$0xff] %vm773, %v772
        %775 = vrot.lane.b32.xlu0 %v756, 48
        %v776 = vpop.permute.xlu0 %775
        %vm777 = vcmask 786048
        %778 = vst.msk [vmem:[%s235] sm:$0xff] %vm777, %v776
        %779 = vrot.lane.b32.xlu0 %v754, 48
        %v780 = vpop.permute.xlu0 %779
        %vm781 = vcmask 917248
        %782 = vst.msk [vmem:[%s235] sm:$0xff] %vm781, %v780
        %783 = vrot.lane.b32.xlu0 %v756, 64
        %v784 = vpop.permute.xlu0 %783
        %vm785 = vcmask 1048448
        %786 = vst.msk [vmem:[%s235] sm:$0xff] %vm785, %v784
        %787 = vrot.lane.b32.xlu0 %v754, 64
        %v788 = vpop.permute.xlu0 %787
        %789 = vst.msk [vmem:[%s235 + $0x8] sm:$0xff] %vm757, %v788
        %790 = vrot.lane.b32.xlu0 %v756, 80
        %v791 = vpop.permute.xlu0 %790
        %792 = vst.msk [vmem:[%s235 + $0x8] sm:$0xff] %vm761, %v791
        %793 = vrot.lane.b32.xlu0 %v754, 80
        %v794 = vpop.permute.xlu0 %793
        %795 = vst.msk [vmem:[%s235 + $0x8] sm:$0xff] %vm765, %v794
        %796 = vrot.lane.b32.xlu0 %v756, 96
        %v797 = vpop.permute.xlu0 %796
        %798 = vst.msk [vmem:[%s235 + $0x8] sm:$0xff] %vm769, %v797
        %799 = vrot.lane.b32.xlu0 %v754, 96
        %v800 = vpop.permute.xlu0 %799
        %801 = vst.msk [vmem:[%s235 + $0x8] sm:$0xff] %vm773, %v800
        %802 = vrot.lane.b32.xlu0 %v756, 112
        %v803 = vpop.permute.xlu0 %802
        %804 = vst.msk [vmem:[%s235 + $0x8] sm:$0xff] %vm777, %v803
        %805 = vrot.lane.b32.xlu0 %v754, 112
        %v806 = vpop.permute.xlu0 %805
        %807 = vst.msk [vmem:[%s235 + $0x8] sm:$0xff] %vm781, %v806
        %808 = vst.msk [vmem:[%s235 + $0x8] sm:$0xff] %vm785, %v756
        %s809 = sand.u32 %s138, 1
        %s810 = scalar_lea.sflag [#allocation3], %s809
        %s811 = sand.u32 %s138, 1
        %s812 = smul.addr %s811, 16
        %s813 = scalar_lea.vmem [#allocation2], %s812
        // Predicated region
        $region37: #{tpu_custom_call.1} parent=35 // pred_check
          %p814 = pneg %p148
        $region38: #{tpu_custom_call.1} parent=35 // pred_check_branch
          %816 = sbr.rel (%p814) target = $region40
        $region39: #{tpu_custom_call.1} parent=35 // pred_region
          %s817 = smul.u32 2, %s23
          %s819 = ssub.s32 256, 256
          %820 = vsyncadd %s810, %s819
          %s821 = smul.addr %s22, 4
          %s822 = sadd.s32 %s817, %s821
          %s823 = smul.addr %s822, 128
          %s824 = scalar_lea.hbm %s4, %s823
          %s826 = sshll.u32 %s813, 4
          %s827 = int_to_ptr.vmem [resolvable:$true] %s826
          %829 = dma.vmem_to_hbm [thread:$0]  %s827, 256, %s824, %s810
        $region40: #{tpu_custom_call.1} parent=35 // pred_fallthru
          _
      $region36: #{tpu_custom_call.1} parent=5 // pred_fallthru
        _
      %p830 = scmp.le.s32.totalorder 2, %s13
      // Predicated region
      $region41: #{tpu_custom_call.1} parent=5 // pred_check
        %p831 = pneg %p830
      $region42: #{tpu_custom_call.1} parent=5 // pred_check_branch
        %833 = sbr.rel (%p831) target = $region44
      $region43: #{tpu_custom_call.1} parent=5 // pred_region
        %s834 = ssub.s32 %s13, 2
        // Predicated region
        $region45: #{tpu_custom_call.1} parent=43 // pred_check
          %p835 = pneg %p154
        $region46: #{tpu_custom_call.1} parent=43 // pred_check_branch
          %837 = sbr.rel (%p835) target = $region48
        $region47: #{tpu_custom_call.1} parent=43 // pred_region
          %s838 = sand.u32 %s139, 1
          %s839 = scalar_lea.sflag [#allocation3], %s838
          %s840 = sand.u32 %s139, 1
          %s841 = smul.addr %s840, 16
          %s842 = scalar_lea.vmem [#allocation2], %s841
          %843 = dma.done %s839, 256
        $region48: #{tpu_custom_call.1} parent=43 // pred_fallthru
          _
      $region44: #{tpu_custom_call.1} parent=5 // pred_fallthru
        _
    $region6: #{tpu_custom_call.1} parent=1 // loop_footer
      %s17 = sadd.s32 1, %s13
    $region7: #{tpu_custom_call.1} parent=1 // loop_footer_branch
      %12 = sbr.rel target = $region3
    $region8: #{tpu_custom_call.1} parent=1 // loop_exit
      _
    %844 = vsyncpa [#allocation3], 1
    %s845 = scalar_lea.sflag [#allocation3], 1
    %846 = vsyncpa %s845, 1

</llo_original>
